<compile_context>
chip_gen: v7x
topology: tpu7x:2x2x1
jax: 0.10.0
libtpu: 0.0.40
codegen_flags: <defaults>
</compile_context>

<pallas_src>
import jax
import jax.numpy as jnp
from jax.experimental import pallas as pl
from jax.experimental.pallas import tpu as pltpu

VMEM_LIMIT_BYTES = 32 * 1024 * 1024   # explicit scoped-VMEM limit (safe on v5e/v6e/v7x)
MAX_BATCH_TILE = 2048                 # upper bound on rows per grid step


def _round_up(x, m):
    return ((x + m - 1) // m) * m


def _choose_batch_tile(F, N):
    """Largest batch tile (multiple of 8, <= MAX_BATCH_TILE) fitting the VMEM budget.

    Accounts for double-buffered x and out tiles plus the (double-buffered)
    resident weight/bias, with headroom for compiler scratch.
    """
    budget = int(VMEM_LIMIT_BYTES * 0.7)
    resident = 4 * (F * N + N)            # weight + bias (one copy)
    per_row = 4 * (2 * F + 2 * N)         # x double-buffer + out double-buffer
    tb = (budget - 2 * resident) // per_row
    tb = max(8, min(MAX_BATCH_TILE, (tb // 8) * 8))
    return int(tb)


def linear_kernel(x_ref, w_ref, b_ref, o_ref):
    # o = x @ W + b with W already in (F, N) MXU layout.
    o_ref[...] = (
        jnp.dot(x_ref[...], w_ref[...], preferred_element_type=jnp.float32)
        + b_ref[...]
    )


def prepare_linear_params(weight, bias):
    """One-time parameter prep (at init, not per call).

    weight: (N, F) PyTorch layout -> (F, N) float32   (canonical MXU RHS layout)
    bias:   (N,)                  -> (1, N) float32
    """
    w = jnp.asarray(weight, jnp.float32).T
    b = jnp.asarray(bias, jnp.float32).reshape(1, -1)
    return w, b


def linear_classifier_forward(x, weight_fn, bias_1n):
    """Forward pass of LinearClassifier.

    x:         (B, F) any float dtype (F = dim*dim)
    weight_fn: (F, N) float32  (pre-transposed, from prepare_linear_params)
    bias_1n:   (1, N) float32
    returns logits (B, N) float32
    """
    x = x.astype(jnp.float32)
    B, F = x.shape
    F2, N = weight_fn.shape
    assert F == F2, "weight must be (F, N) with F = x.shape[1]"

    # Balanced batch tiling: n_tiles = ceil(B / tb_max), tile = ceil(B / n_tiles)
    # rounded up to a sublane multiple; pad B with zero rows to tile * n_tiles.
    tb_max = _choose_batch_tile(F, N)
    n_tiles = -(-B // tb_max)
    TB = min(tb_max, _round_up(-(-B // n_tiles), 8))
    B_pad = TB * n_tiles
    if B_pad != B:
        x = jnp.zeros((B_pad, F), jnp.float32).at[:B].set(x)

    cost = pl.CostEstimate(
        flops=2 * B_pad * F * N,
        transcendentals=0,
        bytes_accessed=4 * (B_pad * F + F * N + B_pad * N + N),
    )

    out = pl.pallas_call(
        linear_kernel,
        out_shape=jax.ShapeDtypeStruct((B_pad, N), jnp.float32),
        grid=(n_tiles,),
        in_specs=[
            pl.BlockSpec((TB, F), lambda i: (i, 0)),   # x: streamed over batch
            pl.BlockSpec((F, N), lambda i: (0, 0)),    # weight: resident
            pl.BlockSpec((1, N), lambda i: (0, 0)),    # bias: resident
        ],
        # Unpadded N output: block last dim equals full array dim, so this is legal;
        # avoids the padded-write + wrapper-slice HBM round trip entirely.
        out_specs=pl.BlockSpec((TB, N), lambda i: (i, 0)),
        compiler_params=pltpu.CompilerParams(
            dimension_semantics=("parallel",),         # shard batch across TCs (v7x)
            vmem_limit_bytes=VMEM_LIMIT_BYTES,
        ),
        cost_estimate=cost,
    )(x, weight_fn, bias_1n)

    return out[:B] if B_pad != B else out


if __name__ == "__main__":
    # Module config: dim=16 -> in_features = dim*dim = 256, num_output = 8
    dim = 16
    num_output = 8
    batch = 2
    in_features = dim * dim

    key = jax.random.PRNGKey(0)
    kx, kw, kb, kx2 = jax.random.split(key, 4)

    # Deterministic parameter init mimicking nn.Linear default:
    # U(-1/sqrt(in_features), 1/sqrt(in_features))
    bound = 1.0 / jnp.sqrt(jnp.float32(in_features))
    weight = jax.random.uniform(kw, (num_output, in_features), jnp.float32,
                                minval=-bound, maxval=bound)
    bias = jax.random.uniform(kb, (num_output,), jnp.float32,
                              minval=-bound, maxval=bound)

    # One-time parameter prep (transpose to (F, N)).
    weight_fn, bias_1n = prepare_linear_params(weight, bias)

    # --- small demo batch (B=2) ---
    x = jax.random.normal(kx, (batch, in_features), jnp.float32)
    logits = linear_classifier_forward(x, weight_fn, bias_1n)
    logits = jax.block_until_ready(logits)

    ref = x @ weight.T + bias
    assert logits.shape == (batch, num_output)
    assert jnp.allclose(logits, ref, atol=1e-4, rtol=1e-5)

    # --- multi-step grid sanity check (non-divisible B exercises pad + cdiv grid) ---
    big_batch = 4100
    x2 = jax.random.normal(kx2, (big_batch, in_features), jnp.float32)
    logits2 = jax.block_until_ready(linear_classifier_forward(x2, weight_fn, bias_1n))
    ref2 = x2 @ weight.T + bias
    assert logits2.shape == (big_batch, num_output)
    assert jnp.allclose(logits2, ref2, atol=1e-4, rtol=1e-5)

    print("KERNEL_OK")
</pallas_src>

<mosaic_0001>
module attributes {stable_mosaic.version = 11 : i64} {
  func.func @linear_kernel(%arg0: i32, %arg1: memref<8x256xf32, #tpu.memory_space<vmem>>, %arg2: memref<256x8xf32, #tpu.memory_space<vmem>>, %arg3: memref<1x8xf32, #tpu.memory_space<vmem>>, %arg4: memref<8x8xf32, #tpu.memory_space<vmem>>) attributes {dimension_semantics = [#tpu.dimension_semantics<parallel>], iteration_bounds = array<i64: 1>, scalar_prefetch = 0 : i64, scratch_operands = 0 : i64, tpu.core_type = #tpu.core_type<tc>, window_params = [{transform_indices = @transform_0, window_bounds = array<i64: 8, 256>}, {pipeline_mode = #tpu.pipeline_mode<synchronous>, transform_indices = @transform_1, window_bounds = array<i64: 256, 8>}, {pipeline_mode = #tpu.pipeline_mode<synchronous>, transform_indices = @transform_2, window_bounds = array<i64: 1, 8>}, {transform_indices = @transform_3, window_bounds = array<i64: 8, 8>}]} {
    %c0 = arith.constant 0 : index
    %c0_0 = arith.constant 0 : index
    %0 = vector.load %arg1[%c0, %c0_0] : memref<8x256xf32, #tpu.memory_space<vmem>>, vector<8x256xf32>
    %c0_1 = arith.constant 0 : index
    %c0_2 = arith.constant 0 : index
    %1 = vector.load %arg2[%c0_1, %c0_2] : memref<256x8xf32, #tpu.memory_space<vmem>>, vector<256x8xf32>
    %cst = arith.constant dense<0.000000e+00> : vector<8x8xf32>
    %2 = tpu.matmul %0, %1, %cst {dimension_numbers = #tpu.dot_dimension_numbers<[1], [0], [0], [1], [0, 0, 1, 1], [], []>} : vector<8x256xf32>, vector<256x8xf32>, vector<8x8xf32> -> vector<8x8xf32>
    %c0_3 = arith.constant 0 : index
    %c0_4 = arith.constant 0 : index
    %3 = vector.load %arg3[%c0_3, %c0_4] : memref<1x8xf32, #tpu.memory_space<vmem>>, vector<1x8xf32>
    %4 = vector.broadcast %3 : vector<1x8xf32> to vector<8x8xf32>
    %5 = arith.addf %2, %4 : vector<8x8xf32>
    %c0_5 = arith.constant 0 : index
    %c0_6 = arith.constant 0 : index
    %6 = vector.load %arg4[%c0_5, %c0_6] : memref<8x8xf32, #tpu.memory_space<vmem>>, vector<8x8xf32>
    tpu.vector_store %arg4[%c0_5, %c0_6], %5 {strides = array<i32>} : memref<8x8xf32, #tpu.memory_space<vmem>>, vector<8x8xf32>,
    return
  }
  func.func @transform_0(%arg0: i32) -> (i32, i32) {
    %c0_i32 = arith.constant 0 : i32
    %c0_i32_0 = arith.constant 0 : i32
    return %arg0, %c0_i32 : i32, i32
  }
  func.func @transform_1(%arg0: i32) -> (i32, i32) {
    %c0_i32 = arith.constant 0 : i32
    %c0_i32_0 = arith.constant 0 : i32
    %c0_i32_1 = arith.constant 0 : i32
    return %c0_i32, %c0_i32_0 : i32, i32
  }
  func.func @transform_2(%arg0: i32) -> (i32, i32) {
    %c0_i32 = arith.constant 0 : i32
    %c0_i32_0 = arith.constant 0 : i32
    %c0_i32_1 = arith.constant 0 : i32
    return %c0_i32, %c0_i32_0 : i32, i32
  }
  func.func @transform_3(%arg0: i32) -> (i32, i32) {
    %c0_i32 = arith.constant 0 : i32
    %c0_i32_0 = arith.constant 0 : i32
    return %arg0, %c0_i32 : i32, i32
  }
}

</mosaic_0001>

<llo_original>
// kernel: tpu_custom_call.1
$region0: #{tpu_custom_call.1}
  #allocation0 [shape = 'u32[]', space=smem, size = 0x4, offset = 0x4, fixed_abs, tag = 'smem constant byte address 0x4 - core index']
  #allocation1 [shape = 'u32[144,128]{1,0:T(1,128)}', space=vmem, size = 0x12000, scoped, tag = 'internal scratch']
  %s0 = inlined_call_operand.vmem [shape: f32[8,256], index: 0, kind: input, shape index: {}]
  %s1 = inlined_call_operand.vmem [shape: f32[256,8], index: 1, kind: input, shape index: {}]
  %s2 = inlined_call_operand.vmem [shape: f32[1,8], index: 2, kind: input, shape index: {}]
  %s3 = inlined_call_operand.hbm [shape: f32[8,8], index: 3, kind: output, shape index: {}]
  %s4 = sld [smem:[#allocation0]]
  $region22: #{tpu_custom_call.1} parent=0
    _
  %s6 = ssub.s32 1, %s4
  %s7 = scalar_select 0, %s6, %s4
  $region1: #{tpu_custom_call.1} parent=0
    #allocation2 [shape = 'u8[4096]{0}', space=vmem, size = 0x1000, scoped, tag = 'output window, operand 0, single buffered']
    #allocation3 [shape = 's32[1]{0}', space=sflag, size = 0x4, scoped, tag = 'scoped memory for tpu_custom_call.1']
    %8 = vsyncpa [#allocation3], 0
    // Predicated region
    $region2: #{tpu_custom_call.1} parent=1 // pred_check
      _
    $region3: #{tpu_custom_call.1} parent=1 // pred_check_branch
      %10 = sbr.rel (0) target = $region5
    $region4: #{tpu_custom_call.1} parent=1 // pred_region
      _
    $region5: #{tpu_custom_call.1} parent=1 // pred_fallthru
      _
    // Predicated region
    $region6: #{tpu_custom_call.1} parent=1 // pred_check
      _
    $region7: #{tpu_custom_call.1} parent=1 // pred_check_branch
      %12 = sbr.rel (0) target = $region9
    $region8: #{tpu_custom_call.1} parent=1 // pred_region
      _
    $region9: #{tpu_custom_call.1} parent=1 // pred_fallthru
      _
    // Predicated region
    $region10: #{tpu_custom_call.1} parent=1 // pred_check
      _
    $region11: #{tpu_custom_call.1} parent=1 // pred_check_branch
      %14 = sbr.rel (0) target = $region13
    $region12: #{tpu_custom_call.1} parent=1 // pred_region
      _
    $region13: #{tpu_custom_call.1} parent=1 // pred_fallthru
      _
    %v15 = vld [vmem:[%s0] sm:$0xff]
    %v16 = vld [vmem:[%s0 + $0x8] sm:$0xff]
    %v17 = vld [vmem:[%s1] sm:$0xff]
    %v18 = vld [vmem:[%s1 + $0x8] sm:$0xff]
    %v19 = vld [vmem:[%s1 + $0x10] sm:$0xff]
    %v20 = vld [vmem:[%s1 + $0x18] sm:$0xff]
    %v21 = vld [vmem:[%s1 + $0x20] sm:$0xff]
    %v22 = vld [vmem:[%s1 + $0x28] sm:$0xff]
    %v23 = vld [vmem:[%s1 + $0x30] sm:$0xff]
    %v24 = vld [vmem:[%s1 + $0x38] sm:$0xff]
    %v25 = vld [vmem:[%s1 + $0x40] sm:$0xff]
    %v26 = vld [vmem:[%s1 + $0x48] sm:$0xff]
    %v27 = vld [vmem:[%s1 + $0x50] sm:$0xff]
    %v28 = vld [vmem:[%s1 + $0x58] sm:$0xff]
    %v29 = vld [vmem:[%s1 + $0x60] sm:$0xff]
    %v30 = vld [vmem:[%s1 + $0x68] sm:$0xff]
    %v31 = vld [vmem:[%s1 + $0x70] sm:$0xff]
    %v32 = vld [vmem:[%s1 + $0x78] sm:$0xff]
    %v33 = vld [vmem:[%s1 + $0x80] sm:$0xff]
    %v34 = vld [vmem:[%s1 + $0x88] sm:$0xff]
    %v35 = vld [vmem:[%s1 + $0x90] sm:$0xff]
    %v36 = vld [vmem:[%s1 + $0x98] sm:$0xff]
    %v37 = vld [vmem:[%s1 + $0xa0] sm:$0xff]
    %v38 = vld [vmem:[%s1 + $0xa8] sm:$0xff]
    %v39 = vld [vmem:[%s1 + $0xb0] sm:$0xff]
    %v40 = vld [vmem:[%s1 + $0xb8] sm:$0xff]
    %v41 = vld [vmem:[%s1 + $0xc0] sm:$0xff]
    %v42 = vld [vmem:[%s1 + $0xc8] sm:$0xff]
    %v43 = vld [vmem:[%s1 + $0xd0] sm:$0xff]
    %v44 = vld [vmem:[%s1 + $0xd8] sm:$0xff]
    %v45 = vld [vmem:[%s1 + $0xe0] sm:$0xff]
    %v46 = vld [vmem:[%s1 + $0xe8] sm:$0xff]
    %v47 = vld [vmem:[%s1 + $0xf0] sm:$0xff]
    %v48 = vld [vmem:[%s1 + $0xf8] sm:$0xff]
    %v49 = vld [vmem:[%s2] sm:$0x1]
    %v51 = vlaneseq
    %v52 = vshrl.u32 %v51, 7
    %v53 = vsub.s32 0, %v52
    %v54 = vrot.slane %v49, %v53
    %56 = vmatprep.subr.mxu0 0.0
    %57 = vmatpush1.msra.mxu0 %v17
    %58 = vmatprep.subr.mxu0 0.0
    %59 = vmatpush1.msra.mxu0 %v18
    %60 = vmatprep.subr.mxu0 0.0
    %61 = vmatpush1.msra.mxu0 %v19
    %62 = vmatprep.subr.mxu0 0.0
    %63 = vmatpush1.msra.mxu0 %v20
    %64 = vmatprep.subr.mxu0 0.0
    %65 = vmatpush1.msra.mxu0 %v21
    %66 = vmatprep.subr.mxu0 0.0
    %67 = vmatpush1.msra.mxu0 %v22
    %68 = vmatprep.subr.mxu0 0.0
    %69 = vmatpush1.msra.mxu0 %v23
    %70 = vmatprep.subr.mxu0 0.0
    %71 = vmatpush1.msra.mxu0 %v24
    %72 = vmatprep.subr.mxu0 0.0
    %73 = vmatpush1.msra.mxu0 %v25
    %74 = vmatprep.subr.mxu0 0.0
    %75 = vmatpush1.msra.mxu0 %v26
    %76 = vmatprep.subr.mxu0 0.0
    %77 = vmatpush1.msra.mxu0 %v27
    %78 = vmatprep.subr.mxu0 0.0
    %79 = vmatpush1.msra.mxu0 %v28
    %80 = vmatprep.subr.mxu0 0.0
    %81 = vmatpush1.msra.mxu0 %v29
    %82 = vmatprep.subr.mxu0 0.0
    %83 = vmatpush1.msra.mxu0 %v30
    %84 = vmatprep.subr.mxu0 0.0
    %85 = vmatpush1.msra.mxu0 %v31
    %86 = vmatprep.subr.mxu0 0.0
    %87 = vmatpush1.msra.mxu0 %v32
    %88 = vmatprep.subr.mxu0 0.0
    %89 = vmatpush1.msra.mxu0 %v33
    %90 = vmatprep.subr.mxu0 0.0
    %91 = vmatpush1.msra.mxu0 %v34
    %92 = vmatprep.subr.mxu0 0.0
    %93 = vmatpush1.msra.mxu0 %v35
    %94 = vmatprep.subr.mxu0 0.0
    %95 = vmatpush1.msra.mxu0 %v36
    %96 = vmatprep.subr.mxu0 0.0
    %97 = vmatpush1.msra.mxu0 %v37
    %98 = vmatprep.subr.mxu0 0.0
    %99 = vmatpush1.msra.mxu0 %v38
    %100 = vmatprep.subr.mxu0 0.0
    %101 = vmatpush1.msra.mxu0 %v39
    %102 = vmatprep.subr.mxu0 0.0
    %103 = vmatpush1.msra.mxu0 %v40
    %104 = vmatprep.subr.mxu0 0.0
    %105 = vmatpush1.msra.mxu0 %v41
    %106 = vmatprep.subr.mxu0 0.0
    %107 = vmatpush1.msra.mxu0 %v42
    %108 = vmatprep.subr.mxu0 0.0
    %109 = vmatpush1.msra.mxu0 %v43
    %110 = vmatprep.subr.mxu0 0.0
    %111 = vmatpush1.msra.mxu0 %v44
    %112 = vmatprep.subr.mxu0 0.0
    %113 = vmatpush1.msra.mxu0 %v45
    %114 = vmatprep.subr.mxu0 0.0
    %115 = vmatpush1.msra.mxu0 %v46
    %116 = vmatprep.subr.mxu0 0.0
    %117 = vmatpush1.msra.mxu0 %v47
    %118 = vmatprep.subr.mxu0 0.0
    %119 = vmatpush1.msra.mxu0 %v48
    %120 = vmatprep.mubr.f32.mxu0 %v16
    %121 = vmatmul.mubr.f32.gmra.mrb[0].mxu0 %v15
    %v122 = vpop.f32.mrb[0].mxu0
    %v123 = vadd.f32 %v54, %v122
    %v124 = vpop.f32.mrb[0].mxu0
    %125 = vdwg.mxu0
    %vm126 = vcmask 64512
    %127 = vst.msk [vmem:[#allocation2] sm:$0xff] %vm126, %v123
    // Predicated region
    $region14: #{tpu_custom_call.1} parent=1 // pred_check
      _
    $region15: #{tpu_custom_call.1} parent=1 // pred_check_branch
      %129 = sbr.rel (0) target = $region17
    $region16: #{tpu_custom_call.1} parent=1 // pred_region
      %s131 = ssub.s32 128, 128
      %132 = vsyncadd [#allocation3], %s131
      %s134 = sshll.u32 [#allocation2], 4
      %s135 = int_to_ptr.vmem [resolvable:$true] %s134
      %137 = dma.vmem_to_hbm [thread:$0]  %s135, 128, %s3, [#allocation3]
    $region17: #{tpu_custom_call.1} parent=1 // pred_fallthru
      _
    // Predicated region
    $region18: #{tpu_custom_call.1} parent=1 // pred_check
      _
    $region19: #{tpu_custom_call.1} parent=1 // pred_check_branch
      %139 = sbr.rel (0) target = $region21
    $region20: #{tpu_custom_call.1} parent=1 // pred_region
      %140 = dma.done [#allocation3], 128
    $region21: #{tpu_custom_call.1} parent=1 // pred_fallthru
      _
    %141 = vsyncpa [#allocation3], 1

</llo_original>
